<compile_context>
chip_gen: v7x
topology: tpu7x:2x2x1
jax: 0.10.0
libtpu: 0.0.40
codegen_flags: <defaults>
</compile_context>

<pallas_src>
import functools

import jax
import jax.numpy as jnp
from jax.experimental import pallas as pl
from jax.experimental.pallas import tpu as pltpu


def _round_up(x, m):
    return ((x + m - 1) // m) * m


def rna_decoder_kernel(z_ref, w1_ref, b1_ref, w2_ref, b2_ref, out_ref):
    # h = relu(z @ W1 + b1): f32 accumulate + f32 bias/ReLU epilogue, then a
    # single cast to the weight dtype for the second MXU pass.
    h = jnp.dot(z_ref[...], w1_ref[...], preferred_element_type=jnp.float32)
    h = jnp.maximum(h + b1_ref[...], 0.0).astype(w2_ref.dtype)
    # Fused [mu | logvar] projection: one MXU matmul + one lane-dense store.
    acc = jnp.dot(h, w2_ref[...], preferred_element_type=jnp.float32)
    out_ref[...] = (acc + b2_ref[...]).astype(out_ref.dtype)


def prepare_decoder_params(w1, b1, wmu, bmu, wlv, blv, *, weight_dtype=jnp.bfloat16):
    """One-time weight fusion / padding / casting (call OUTSIDE the forward path)."""
    out_dim = wmu.shape[1]
    out_pad = _round_up(out_dim, 128)

    def pad_cols(a):
        return jnp.pad(a, ((0, 0), (0, out_pad - a.shape[-1])))

    w2 = jnp.concatenate([pad_cols(wmu), pad_cols(wlv)], axis=1).astype(weight_dtype)
    b2 = jnp.concatenate([pad_cols(bmu.reshape(1, -1)),
                          pad_cols(blv.reshape(1, -1))], axis=1).astype(jnp.float32)
    w1p = w1.astype(weight_dtype)
    b1p = b1.reshape(1, -1).astype(jnp.float32)
    return w1p, b1p, w2, b2, out_dim, out_pad


def rna_decoder(z, w1, b1, w2, b2, *, out_dim, vmem_budget_bytes=24 << 20):
    """z: [B, latent]; prepared weights from prepare_decoder_params.

    Returns (mu, logvar), each [B, out_dim] float32.
    """
    B, latent = z.shape
    hidden, n_tot = w2.shape
    out_pad = n_tot // 2
    wbytes = w2.dtype.itemsize

    # ---- batch tile: choose tm first, pad the batch UP to it --------------
    if B >= 1024:
        tm = 256                      # 256x256 MXU-friendly on v6e/v7x
    elif B >= 128:
        tm = 128
    else:
        tm = _round_up(max(B, 16), 16)  # 16-row alignment for packed bf16
    b_pad = _round_up(B, tm)
    num_i = b_pad // tm

    # ---- output tile: full fused width if the W2 block fits the budget ----
    def step_bytes(tn_):
        # double-buffered z/W1/b1/W2/b2/out blocks (conservative)
        return 2 * (tm * latent * wbytes + latent * hidden * wbytes + hidden * 4
                    + hidden * tn_ * wbytes + tn_ * 4 + tm * tn_ * 4)

    tn = n_tot
    while step_bytes(tn) > vmem_budget_bytes and tn % 256 == 0:
        tn //= 2
    # Small-batch megacore: with a single batch tile, split [mu|logvar] into
    # two output tiles so both v7x TensorCores get work (the extra h recompute
    # is ~latent/n_tot of the FLOPs -> negligible).
    if num_i == 1 and tn == n_tot and (tn // 2) % 128 == 0:
        tn //= 2
    num_j = n_tot // tn

    z_p = jnp.pad(z, ((0, b_pad - B), (0, 0))).astype(w1.dtype)

    flops = 2 * b_pad * hidden * (num_j * latent + n_tot)
    bytes_accessed = int(num_j * z_p.size * z_p.dtype.itemsize
                         + w1.size * wbytes + b1.size * 4
                         + w2.size * wbytes + b2.size * 4
                         + b_pad * n_tot * 4)
    vmem_limit = int(min(64 << 20, max(step_bytes(tn) + (2 << 20), 16 << 20)))

    out = pl.pallas_call(
        rna_decoder_kernel,
        out_shape=jax.ShapeDtypeStruct((b_pad, n_tot), jnp.float32),
        grid_spec=pltpu.PrefetchScalarGridSpec(
            num_scalar_prefetch=0,
            # out-tile axis OUTERMOST: W2/b2 block index constant across the
            # inner batch steps -> each W2 tile is DMA'd from HBM exactly once.
            grid=(num_j, num_i),
            in_specs=[
                pl.BlockSpec((tm, latent), lambda j, i: (i, 0)),       # z (bf16)
                pl.BlockSpec((latent, hidden), lambda j, i: (0, 0)),   # W1 (resident)
                pl.BlockSpec((1, hidden), lambda j, i: (0, 0)),        # b1 (resident)
                pl.BlockSpec((hidden, tn), lambda j, i: (0, j)),       # fused W_mu|W_lv
                pl.BlockSpec((1, tn), lambda j, i: (0, j)),            # fused b_mu|b_lv
            ],
            out_specs=pl.BlockSpec((tm, tn), lambda j, i: (i, j)),
        ),
        compiler_params=pltpu.CompilerParams(
            dimension_semantics=("parallel", "parallel"),
            vmem_limit_bytes=vmem_limit),
        cost_estimate=pl.CostEstimate(flops=int(flops), transcendentals=0,
                                      bytes_accessed=bytes_accessed),
    )(z_p, w1, b1, w2, b2)

    mu = out[:B, :out_dim]
    logvar = out[:B, out_pad:out_pad + out_dim]
    return mu, logvar


def init_params(key, latent_dim, output_dim, hidden_dim):
    """Deterministic init mimicking PyTorch nn.Linear (uniform +/- 1/sqrt(fan_in))."""
    ks = jax.random.split(key, 6)

    def lin(kw, kb, fan_in, fan_out):
        bound = 1.0 / jnp.sqrt(fan_in)
        w = jax.random.uniform(kw, (fan_in, fan_out), jnp.float32, -bound, bound)
        b = jax.random.uniform(kb, (1, fan_out), jnp.float32, -bound, bound)
        return w, b

    w1, b1 = lin(ks[0], ks[1], latent_dim, hidden_dim)
    wmu, bmu = lin(ks[2], ks[3], hidden_dim, output_dim)
    wlv, blv = lin(ks[4], ks[5], hidden_dim, output_dim)
    return w1, b1, wmu, bmu, wlv, blv


if __name__ == "__main__":
    # Small but non-trivial shapes: OUT not 128-aligned (exercises column
    # padding), B=20 not 16-aligned (exercises batch padding), and the
    # single-batch-tile path splits mu|logvar into two output tiles
    # (exercises the 2-D grid and the once-only W2 streaming).
    B, LATENT, HIDDEN, OUT = 20, 32, 512, 300

    key = jax.random.PRNGKey(0)
    k_z, k_p = jax.random.split(key)
    z = jax.random.normal(k_z, (B, LATENT), jnp.float32)
    raw_params = init_params(k_p, LATENT, OUT, HIDDEN)

    # One-time weight fusion / pad / bf16 cast, hoisted out of the forward path.
    w1p, b1p, w2p, b2p, out_dim, out_pad = prepare_decoder_params(*raw_params)

    fwd = jax.jit(functools.partial(rna_decoder, out_dim=out_dim))
    mu, logvar = fwd(z, w1p, b1p, w2p, b2p)
    jax.block_until_ready((mu, logvar))

    # Reference in plain JAX with the same bf16-weight / f32-accumulate flow.
    w1, b1, wmu, bmu, wlv, blv = raw_params
    h_ref = jnp.maximum(
        jnp.dot(z.astype(jnp.bfloat16), w1.astype(jnp.bfloat16),
                preferred_element_type=jnp.float32) + b1, 0.0)
    h_b = h_ref.astype(jnp.bfloat16)
    mu_ref = jnp.dot(h_b, wmu.astype(jnp.bfloat16),
                     preferred_element_type=jnp.float32) + bmu
    lv_ref = jnp.dot(h_b, wlv.astype(jnp.bfloat16),
                     preferred_element_type=jnp.float32) + blv

    assert mu.shape == (B, OUT) and logvar.shape == (B, OUT)
    assert jnp.allclose(mu, mu_ref, atol=1e-2, rtol=1e-2), "mu mismatch"
    assert jnp.allclose(logvar, lv_ref, atol=1e-2, rtol=1e-2), "logvar mismatch"

    print("KERNEL_OK")
</pallas_src>

<mosaic_0001>
module attributes {stable_mosaic.version = 11 : i64} {
  func.func @rna_decoder_kernel(%arg0: i32, %arg1: i32, %arg2: memref<32x32xbf16, #tpu.memory_space<vmem>>, %arg3: memref<32x512xbf16, #tpu.memory_space<vmem>>, %arg4: memref<1x512xf32, #tpu.memory_space<vmem>>, %arg5: memref<512x384xbf16, #tpu.memory_space<vmem>>, %arg6: memref<1x384xf32, #tpu.memory_space<vmem>>, %arg7: memref<32x384xf32, #tpu.memory_space<vmem>>) attributes {dimension_semantics = [#tpu.dimension_semantics<parallel>, #tpu.dimension_semantics<parallel>], iteration_bounds = array<i64: 2, 1>, scalar_prefetch = 0 : i64, scratch_operands = 0 : i64, tpu.core_type = #tpu.core_type<tc>, window_params = [{transform_indices = @transform_0, window_bounds = array<i64: 32, 32>}, {pipeline_mode = #tpu.pipeline_mode<synchronous>, transform_indices = @transform_1, window_bounds = array<i64: 32, 512>}, {pipeline_mode = #tpu.pipeline_mode<synchronous>, transform_indices = @transform_2, window_bounds = array<i64: 1, 512>}, {transform_indices = @transform_3, window_bounds = array<i64: 512, 384>}, {transform_indices = @transform_4, window_bounds = array<i64: 1, 384>}, {transform_indices = @transform_5, window_bounds = array<i64: 32, 384>}]} {
    %c0 = arith.constant 0 : index
    %c0_0 = arith.constant 0 : index
    %0 = vector.load %arg2[%c0, %c0_0] : memref<32x32xbf16, #tpu.memory_space<vmem>>, vector<32x32xbf16>
    %c0_1 = arith.constant 0 : index
    %c0_2 = arith.constant 0 : index
    %1 = vector.load %arg3[%c0_1, %c0_2] : memref<32x512xbf16, #tpu.memory_space<vmem>>, vector<32x512xbf16>
    %cst = arith.constant dense<0.000000e+00> : vector<32x512xf32>
    %2 = tpu.matmul %0, %1, %cst {dimension_numbers = #tpu.dot_dimension_numbers<[1], [0], [0], [1], [0, 0, 1, 1], [], []>} : vector<32x32xbf16>, vector<32x512xbf16>, vector<32x512xf32> -> vector<32x512xf32>
    %c0_3 = arith.constant 0 : index
    %c0_4 = arith.constant 0 : index
    %3 = vector.load %arg4[%c0_3, %c0_4] : memref<1x512xf32, #tpu.memory_space<vmem>>, vector<1x512xf32>
    %4 = vector.broadcast %3 : vector<1x512xf32> to vector<32x512xf32>
    %5 = arith.addf %2, %4 : vector<32x512xf32>
    %cst_5 = arith.constant 0.000000e+00 : f32
    %6 = vector.broadcast %cst_5 : f32 to vector<32x512xf32>
    %7 = arith.maximumf %5, %6 : vector<32x512xf32>
    %8 = arith.truncf %7 : vector<32x512xf32> to vector<32x512xbf16>
    %c0_6 = arith.constant 0 : index
    %c0_7 = arith.constant 0 : index
    %9 = vector.load %arg5[%c0_6, %c0_7] : memref<512x384xbf16, #tpu.memory_space<vmem>>, vector<512x384xbf16>
    %cst_8 = arith.constant dense<0.000000e+00> : vector<32x384xf32>
    %10 = tpu.matmul %8, %9, %cst_8 {dimension_numbers = #tpu.dot_dimension_numbers<[1], [0], [0], [1], [0, 0, 1, 1], [], []>} : vector<32x512xbf16>, vector<512x384xbf16>, vector<32x384xf32> -> vector<32x384xf32>
    %c0_9 = arith.constant 0 : index
    %c0_10 = arith.constant 0 : index
    %11 = vector.load %arg6[%c0_9, %c0_10] : memref<1x384xf32, #tpu.memory_space<vmem>>, vector<1x384xf32>
    %12 = vector.broadcast %11 : vector<1x384xf32> to vector<32x384xf32>
    %13 = arith.addf %10, %12 : vector<32x384xf32>
    %c0_11 = arith.constant 0 : index
    %c0_12 = arith.constant 0 : index
    %14 = vector.load %arg7[%c0_11, %c0_12] : memref<32x384xf32, #tpu.memory_space<vmem>>, vector<32x384xf32>
    tpu.vector_store %arg7[%c0_11, %c0_12], %13 {strides = array<i32>} : memref<32x384xf32, #tpu.memory_space<vmem>>, vector<32x384xf32>,
    return
  }
  func.func @transform_0(%arg0: i32, %arg1: i32) -> (i32, i32) {
    %c0_i32 = arith.constant 0 : i32
    %c0_i32_0 = arith.constant 0 : i32
    return %arg1, %c0_i32 : i32, i32
  }
  func.func @transform_1(%arg0: i32, %arg1: i32) -> (i32, i32) {
    %c0_i32 = arith.constant 0 : i32
    %c0_i32_0 = arith.constant 0 : i32
    %c0_i32_1 = arith.constant 0 : i32
    return %c0_i32, %c0_i32_0 : i32, i32
  }
  func.func @transform_2(%arg0: i32, %arg1: i32) -> (i32, i32) {
    %c0_i32 = arith.constant 0 : i32
    %c0_i32_0 = arith.constant 0 : i32
    %c0_i32_1 = arith.constant 0 : i32
    return %c0_i32, %c0_i32_0 : i32, i32
  }
  func.func @transform_3(%arg0: i32, %arg1: i32) -> (i32, i32) {
    %c0_i32 = arith.constant 0 : i32
    %c0_i32_0 = arith.constant 0 : i32
    return %c0_i32, %arg0 : i32, i32
  }
  func.func @transform_4(%arg0: i32, %arg1: i32) -> (i32, i32) {
    %c0_i32 = arith.constant 0 : i32
    %c0_i32_0 = arith.constant 0 : i32
    return %c0_i32, %arg0 : i32, i32
  }
  func.func @transform_5(%arg0: i32, %arg1: i32) -> (i32, i32) {
    %c0_i32 = arith.constant 0 : i32
    return %arg1, %arg0 : i32, i32
  }
}

</mosaic_0001>

<llo_original>
// kernel: rna_decoder.1
$region0: #{rna_decoder.1}
  #allocation0 [shape = 'u32[]', space=smem, size = 0x4, offset = 0x4, fixed_abs, tag = 'smem constant byte address 0x4 - core index']
  #allocation1 [shape = 'u32[144,128]{1,0:T(1,128)}', space=vmem, size = 0x12000, scoped, tag = 'internal scratch']
  %s0 = inlined_call_operand.vmem [shape: bf16[32,32], index: 0, kind: input, shape index: {}]
  %s1 = inlined_call_operand.vmem [shape: bf16[32,512], index: 1, kind: input, shape index: {}]
  %s2 = inlined_call_operand.hbm [shape: f32[1,512], index: 2, kind: input, shape index: {}]
  %s3 = inlined_call_operand.hbm [shape: bf16[512,768], index: 3, kind: input, shape index: {}]
  %s4 = inlined_call_operand.vmem [shape: f32[1,768], index: 4, kind: input, shape index: {}]
  %s5 = inlined_call_operand.vmem [shape: f32[32,768], index: 5, kind: output, shape index: {}]
  %s6 = sld [smem:[#allocation0]]
  $region80: #{rna_decoder.1} parent=0
    _
  %s8 = ssub.s32 1, %s6
  %s9 = scalar_select 0, %s8, %s6
  $region1: #{rna_decoder.1} parent=0
    #allocation2 [shape = 'u8[2048]{0}', space=vmem, size = 0x800, scoped, tag = 'input window, operand 2, single buffered']
    #allocation3 [shape = 's32[2]{0}', space=sflag, size = 0x8, scoped, tag = 'scoped memory for rna_decoder.1']
    #allocation4 [shape = 'u8[786432]{0}', space=vmem, size = 0xc0000, scoped, tag = 'input window, operand 3']
    #allocation5 [shape = 's32[2]{0}', space=sflag, size = 0x8, scoped, tag = 'scoped memory for rna_decoder.1']
    #allocation6 [shape = 'u8[98304]{0}', space=vmem, size = 0x18000, scoped, tag = 'output window, operand 0']
    %10 = vsyncpa [#allocation3], 0
    %11 = vsyncpa [#allocation5], 0
    %s12 = scalar_lea.sflag [#allocation5], 1
    %13 = vsyncpa %s12, 0
    loop: start=0, step=1, limit=4
    $region2: #{rna_decoder.1} parent=1 // loop_pre_header
      _
    $region3: #{rna_decoder.1} parent=1 // loop_header
      %s15 = sphi 0, %s19
      %p16 = scmp.ge.s32.totalorder %s15, 4
      %s22 = sphi 0, %s34
      %s23 = sphi 0, %s30
      %s24 = sphi 0, %s22
      %s25 = sphi 0, %s23
      %s26 = sphi 0, %s24
      %s27 = sphi 0, %s25
      %s37 = sphi 0, %s39
      %s40 = sphi 0, %s37
      %s41 = sphi 0, %s40
      %s57 = sphi 0, %s41
      %s61 = sphi 0, %s61
      %s63 = sphi 0, %s61
      %s64 = sphi 0, %s63
      %s78 = sphi 0, %s64
      %s82 = sphi 0, %s82
      %s84 = sphi 0, %s82
      %s85 = sphi 0, %s84
      %s99 = sphi 0, %s85
      %s105 = sphi 0, %s107
      %s108 = sphi 0, %s105
      %s109 = sphi 0, %s108
      %s125 = sphi 0, %s109
      %s131 = sphi 0, %s133
      %s134 = sphi 0, %s131
      %s135 = sphi 0, %s134
      %s151 = sphi 0, %s135
      %s159 = sphi 0, %s161
      %s162 = sphi 0, %s159
      %s163 = sphi 0, %s162
      %s179 = sphi 0, %s163
    $region4: #{rna_decoder.1} parent=1 // loop_header_branch
      %18 = sbr.rel (%p16) target = $region8
    $region5: #{rna_decoder.1} parent=1 // loop_body
      %s20 = ssub.s32 %s15, 1
      %s21 = ssub.s32 %s15, 2
      %s28 = sadd.s32 1, %s23
      %p29 = scmp.ge.s32.totalorder %s28, 1
      %s30 = scalar_select %p29, 0, %s28
      %s31 = sadd.s32 1, %s22
      %s32 = scalar_select %p29, %s31, %s22
      %p33 = scmp.ge.s32.totalorder %s32, 2
      %s34 = scalar_select %p33, 0, %s32
      %s35 = ssub.s32 %s23, %s30
      %p36 = scmp.eq.s32.totalorder %s35, 0
      %s38 = sadd.s32 %s37, 1
      %s39 = scalar_select %p36, %s37, %s38
      %p42 = pneg %p36
      %p43 = scmp.eq.s32.totalorder %s15, 1
      %p44 = por %p42, %p43
      %p45 = scmp.ne.s32.totalorder %s37, %s40
      %p46 = scmp.eq.s32.totalorder %s15, 0
      %p47 = por %p45, %p46
      %p48 = scmp.ne.s32.totalorder %s37, %s40
      %p49 = scmp.eq.s32.totalorder %s20, 1
      %p50 = por %p48, %p49
      %p51 = scmp.ne.s32.totalorder %s40, %s41
      %p52 = scmp.eq.s32.totalorder %s20, 0
      %p53 = por %p51, %p52
      %p54 = scmp.ne.s32.totalorder %s40, %s41
      %p55 = scmp.eq.s32.totalorder %s21, 1
      %p56 = por %p54, %p55
      %p58 = scmp.ne.s32.totalorder %s41, %s57
      %p59 = scmp.eq.s32.totalorder %s21, 0
      %p60 = por %p58, %p59
      %s62 = sadd.s32 %s61, 1
      %p65 = scmp.eq.s32.totalorder %s15, 1
      %p66 = scmp.ne.s32.totalorder %s61, %s63
      %p67 = scmp.eq.s32.totalorder %s15, 0
      %p68 = por %p66, %p67
      %p69 = scmp.ne.s32.totalorder %s61, %s63
      %p70 = scmp.eq.s32.totalorder %s20, 1
      %p71 = por %p69, %p70
      %p72 = scmp.ne.s32.totalorder %s63, %s64
      %p73 = scmp.eq.s32.totalorder %s20, 0
      %p74 = por %p72, %p73
      %p75 = scmp.ne.s32.totalorder %s63, %s64
      %p76 = scmp.eq.s32.totalorder %s21, 1
      %p77 = por %p75, %p76
      %p79 = scmp.ne.s32.totalorder %s64, %s78
      %p80 = scmp.eq.s32.totalorder %s21, 0
      %p81 = por %p79, %p80
      %s83 = sadd.s32 %s82, 1
      %p86 = scmp.eq.s32.totalorder %s15, 1
      %p87 = scmp.ne.s32.totalorder %s82, %s84
      %p88 = scmp.eq.s32.totalorder %s15, 0
      %p89 = por %p87, %p88
      %p90 = scmp.ne.s32.totalorder %s82, %s84
      %p91 = scmp.eq.s32.totalorder %s20, 1
      %p92 = por %p90, %p91
      %p93 = scmp.ne.s32.totalorder %s84, %s85
      %p94 = scmp.eq.s32.totalorder %s20, 0
      %p95 = por %p93, %p94
      %p96 = scmp.ne.s32.totalorder %s84, %s85
      %p97 = scmp.eq.s32.totalorder %s21, 1
      %p98 = por %p96, %p97
      %p100 = scmp.ne.s32.totalorder %s85, %s99
      %p101 = scmp.eq.s32.totalorder %s21, 0
      %p102 = por %p100, %p101
      %s103 = ssub.s32 %s22, %s34
      %p104 = scmp.eq.s32.totalorder %s103, 0
      %s106 = sadd.s32 %s105, 1
      %s107 = scalar_select %p104, %s105, %s106
      %p110 = pneg %p104
      %p111 = scmp.eq.s32.totalorder %s15, 1
      %p112 = por %p110, %p111
      %p113 = scmp.ne.s32.totalorder %s105, %s108
      %p114 = scmp.eq.s32.totalorder %s15, 0
      %p115 = por %p113, %p114
      %p116 = scmp.ne.s32.totalorder %s105, %s108
      %p117 = scmp.eq.s32.totalorder %s20, 1
      %p118 = por %p116, %p117
      %p119 = scmp.ne.s32.totalorder %s108, %s109
      %p120 = scmp.eq.s32.totalorder %s20, 0
      %p121 = por %p119, %p120
      %p122 = scmp.ne.s32.totalorder %s108, %s109
      %p123 = scmp.eq.s32.totalorder %s21, 1
      %p124 = por %p122, %p123
      %p126 = scmp.ne.s32.totalorder %s109, %s125
      %p127 = scmp.eq.s32.totalorder %s21, 0
      %p128 = por %p126, %p127
      %s129 = ssub.s32 %s22, %s34
      %p130 = scmp.eq.s32.totalorder %s129, 0
      %s132 = sadd.s32 %s131, 1
      %s133 = scalar_select %p130, %s131, %s132
      %p136 = pneg %p130
      %p137 = scmp.eq.s32.totalorder %s15, 1
      %p138 = por %p136, %p137
      %p139 = scmp.ne.s32.totalorder %s131, %s134
      %p140 = scmp.eq.s32.totalorder %s15, 0
      %p141 = por %p139, %p140
      %p142 = scmp.ne.s32.totalorder %s131, %s134
      %p143 = scmp.eq.s32.totalorder %s20, 1
      %p144 = por %p142, %p143
      %p145 = scmp.ne.s32.totalorder %s134, %s135
      %p146 = scmp.eq.s32.totalorder %s20, 0
      %p147 = por %p145, %p146
      %p148 = scmp.ne.s32.totalorder %s134, %s135
      %p149 = scmp.eq.s32.totalorder %s21, 1
      %p150 = por %p148, %p149
      %p152 = scmp.ne.s32.totalorder %s135, %s151
      %p153 = scmp.eq.s32.totalorder %s21, 0
      %p154 = por %p152, %p153
      %s155 = ssub.s32 %s23, %s30
      %s156 = ssub.s32 %s22, %s34
      %s157 = sor.u32 %s155, %s156
      %p158 = scmp.eq.s32.totalorder %s157, 0
      %s160 = sadd.s32 %s159, 1
      %s161 = scalar_select %p158, %s159, %s160
      %p164 = pneg %p158
      %p165 = scmp.eq.s32.totalorder %s15, 1
      %p166 = por %p164, %p165
      %p167 = scmp.ne.s32.totalorder %s159, %s162
      %p168 = scmp.eq.s32.totalorder %s15, 0
      %p169 = por %p167, %p168
      %p170 = scmp.ne.s32.totalorder %s159, %s162
      %p171 = scmp.eq.s32.totalorder %s20, 1
      %p172 = por %p170, %p171
      %p173 = scmp.ne.s32.totalorder %s162, %s163
      %p174 = scmp.eq.s32.totalorder %s20, 0
      %p175 = por %p173, %p174
      %p176 = scmp.ne.s32.totalorder %s162, %s163
      %p177 = scmp.eq.s32.totalorder %s21, 1
      %p178 = por %p176, %p177
      %p180 = scmp.ne.s32.totalorder %s163, %s179
      %p181 = scmp.eq.s32.totalorder %s21, 0
      %p182 = por %p180, %p181
      %p183 = scmp.le.s32.totalorder 1, %s15
      %p184 = scmp.lt.s32.totalorder %s15, 3
      %p185 = pnand %p183, %p184
      %p186 = pneg %p185
      // Predicated region
      $region9: #{rna_decoder.1} parent=5 // pred_check
        _
      $region10: #{rna_decoder.1} parent=5 // pred_check_branch
        %188 = sbr.rel (%p185) target = $region12
      $region11: #{rna_decoder.1} parent=5 // pred_region
        %s189 = ssub.s32 %s15, 1
        // Predicated region
        $region13: #{rna_decoder.1} parent=11 // pred_check
          %p190 = pneg %p53
        $region14: #{rna_decoder.1} parent=11 // pred_check_branch
          %192 = sbr.rel (%p190) target = $region16
        $region15: #{rna_decoder.1} parent=11 // pred_region
          %s193 = smul.u32 4, %s25
          %p194 = scmp.lt.s32.totalorder %s193, 3
          %s195 = scalar_select %p194, %s193, 3
          %s196 = smul.addr %s195, 4
          %s197 = scalar_lea.vmem %s0, %s196
          %s198 = smul.u32 4, %s25
        $region16: #{rna_decoder.1} parent=11 // pred_fallthru
          _
        // Predicated region
        $region17: #{rna_decoder.1} parent=11 // pred_check
          %p199 = pneg %p74
        $region18: #{rna_decoder.1} parent=11 // pred_check_branch
          %201 = sbr.rel (%p199) target = $region20
        $region19: #{rna_decoder.1} parent=11 // pred_region
          _
        $region20: #{rna_decoder.1} parent=11 // pred_fallthru
          _
        // Predicated region
        $region21: #{rna_decoder.1} parent=11 // pred_check
          %p202 = pneg %p95
        $region22: #{rna_decoder.1} parent=11 // pred_check_branch
          %204 = sbr.rel (%p202) target = $region24
        $region23: #{rna_decoder.1} parent=11 // pred_region
          %s206 = ssub.s32 64, 64
          %207 = vsyncadd [#allocation3], %s206
          %s209 = sshll.u32 [#allocation2], 4
          %s210 = int_to_ptr.vmem [resolvable:$true] %s209
          %212 = dma.hbm_to_vmem [thread:$0]  %s2, 64, %s210, [#allocation3]
        $region24: #{rna_decoder.1} parent=11 // pred_fallthru
          _
      $region12: #{rna_decoder.1} parent=5 // pred_fallthru
        _
      %p213 = scmp.lt.s32.totalorder %s15, 2
      // Predicated region
      $region25: #{rna_decoder.1} parent=5 // pred_check
        %p214 = pneg %p213
      $region26: #{rna_decoder.1} parent=5 // pred_check_branch
        %216 = sbr.rel (%p214) target = $region28
      $region27: #{rna_decoder.1} parent=5 // pred_region
        // Predicated region
        $region29: #{rna_decoder.1} parent=27 // pred_check
          %p217 = pneg %p115
        $region30: #{rna_decoder.1} parent=27 // pred_check_branch
          %219 = sbr.rel (%p217) target = $region32
        $region31: #{rna_decoder.1} parent=27 // pred_region
          %s220 = sand.u32 %s105, 1
          %s221 = scalar_lea.sflag [#allocation5], %s220
          %s222 = sand.u32 %s105, 1
          %s223 = smul.addr %s222, 768
          %s224 = scalar_lea.vmem [#allocation4], %s223
          %s225 = smul.u32 3, %s22
          %s227 = ssub.s32 12288, 12288
          %228 = vsyncadd %s221, %s227
          %s229 = smul.addr %s225, 64
          %s230 = scalar_lea.hbm %s3, %s229
          %s231 = sshll.u32 %s224, 4
          %s232 = int_to_ptr.vmem [resolvable:$true] %s231
          %237 = dma.hbm_to_vmem [thread:$0]  %s230, 12288, %s232, %s221, 384, 192, 12
        $region32: #{rna_decoder.1} parent=27 // pred_fallthru
          _
        // Predicated region
        $region33: #{rna_decoder.1} parent=27 // pred_check
          %p238 = pneg %p141
        $region34: #{rna_decoder.1} parent=27 // pred_check_branch
          %240 = sbr.rel (%p238) target = $region36
        $region35: #{rna_decoder.1} parent=27 // pred_region
          %s241 = smul.u32 3, %s22
          %p242 = scmp.lt.s32.totalorder %s241, 5
          %s243 = scalar_select %p242, %s241, 5
          %s244 = scalar_lea.vmem %s4, %s243
          %s245 = smul.u32 3, %s22
        $region36: #{rna_decoder.1} parent=27 // pred_fallthru
          _
      $region28: #{rna_decoder.1} parent=5 // pred_fallthru
        _
      %p246 = scmp.le.s32.totalorder 1, %s15
      %p247 = scmp.lt.s32.totalorder %s15, 3
      %p248 = pnand %p246, %p247
      %p249 = pneg %p248
      // Predicated region
      $region37: #{rna_decoder.1} parent=5 // pred_check
        _
      $region38: #{rna_decoder.1} parent=5 // pred_check_branch
        %251 = sbr.rel (%p248) target = $region40
      $region39: #{rna_decoder.1} parent=5 // pred_region
        %s252 = ssub.s32 %s15, 1
        // Predicated region
        $region41: #{rna_decoder.1} parent=39 // pred_check
          %p253 = pneg %p95
        $region42: #{rna_decoder.1} parent=39 // pred_check_branch
          %255 = sbr.rel (%p253) target = $region44
        $region43: #{rna_decoder.1} parent=39 // pred_region
          %256 = dma.done [#allocation3], 64
        $region44: #{rna_decoder.1} parent=39 // pred_fallthru
          _
        %s257 = sand.u32 %s108, 1
        %s258 = scalar_lea.sflag [#allocation5], %s257
        %s259 = sand.u32 %s108, 1
        %s260 = smul.addr %s259, 768
        %s261 = scalar_lea.vmem [#allocation4], %s260
        // Predicated region
        $region45: #{rna_decoder.1} parent=39 // pred_check
          %p262 = pneg %p121
        $region46: #{rna_decoder.1} parent=39 // pred_check_branch
          %264 = sbr.rel (%p262) target = $region48
        $region47: #{rna_decoder.1} parent=39 // pred_region
          %265 = dma.done %s258, 12288
        $region48: #{rna_decoder.1} parent=39 // pred_fallthru
          _
        %s266 = smul.u32 4, %s25
        %p267 = scmp.lt.s32.totalorder %s266, 3
        %s268 = scalar_select %p267, %s266, 3
        %s269 = smul.addr %s268, 4
        %s270 = scalar_lea.vmem %s0, %s269
        %p271 = pneg %p53
        %p272 = pneg %p50
        %p273 = pneg %p74
        %p274 = pneg %p71
        %p275 = pneg %p95
        %p276 = pneg %p92
        %s277 = sand.u32 %s108, 1
        %s278 = scalar_lea.sflag [#allocation5], %s277
        %s279 = sand.u32 %s108, 1
        %s280 = smul.addr %s279, 768
        %s281 = scalar_lea.vmem [#allocation4], %s280
        %p282 = pneg %p121
        %p283 = pneg %p118
        %s284 = smul.u32 3, %s24
        %p285 = scmp.lt.s32.totalorder %s284, 5
        %s286 = scalar_select %p285, %s284, 5
        %s287 = scalar_lea.vmem %s4, %s286
        %p288 = pneg %p147
        %p289 = pneg %p144
        %p290 = pneg %p175
        %p291 = pneg %p172
        %s292 = sand.u32 %s162, 1
        %s293 = sand.u32 %s162, 1
        %s294 = smul.addr %s293, 96
        %s295 = scalar_lea.vmem [#allocation6], %s294
        %s296 = smul.u32 4, %s25
        %p297 = scmp.lt.s32.totalorder %s296, 3
        %s298 = scalar_select %p297, %s296, 3
        %s299 = smul.addr %s298, 4
        %s300 = scalar_lea.vmem %s0, %s299
        %s301 = smul.u32 4, %s25
        %s302 = smul.u32 3, %s24
        %s303 = smul.u32 3, %s24
        %p304 = scmp.lt.s32.totalorder %s303, 5
        %s305 = scalar_select %p304, %s303, 5
        %s306 = scalar_lea.vmem %s4, %s305
        %s307 = smul.u32 3, %s24
        %s308 = smul.u32 4, %s25
        %s309 = smul.u32 3, %s24
        %v311 = vld [vmem:[%s300] sm:$0xf]
        %v312 = vld [vmem:[%s300 + $0x4] sm:$0xf]
        %v313 = vld [vmem:[%s300 + $0x8] sm:$0xf]
        %v314 = vld [vmem:[%s300 + $0xc] sm:$0xf]
        %v315 = vld [vmem:[%s1] sm:$0xff]
        %v316 = vld [vmem:[%s1 + $0x8] sm:$0xff]
        %v317 = vld [vmem:[%s1 + $0x10] sm:$0xff]
        %v318 = vld [vmem:[%s1 + $0x18] sm:$0xff]
        %v319 = vld [vmem:[%s1 + $0x20] sm:$0xff]
        %v320 = vld [vmem:[%s1 + $0x28] sm:$0xff]
        %v321 = vld [vmem:[%s1 + $0x30] sm:$0xff]
        %v322 = vld [vmem:[%s1 + $0x38] sm:$0xff]
        %v323 = vld [vmem:[#allocation2] sm:$0xf]
        %v325 = vlaneseq
        %v326 = vshrl.u32 %v325, 7
        %v327 = vsub.s32 0, %v326
        %v328 = vrot.slane %v323, %v327
        %v329 = vlaneseq
        %v330 = vshrl.u32 %v329, 7
        %v331 = vsub.s32 1, %v330
        %v332 = vrot.slane %v323, %v331
        %v333 = vlaneseq
        %v334 = vshrl.u32 %v333, 7
        %v335 = vsub.s32 2, %v334
        %v336 = vrot.slane %v323, %v335
        %v337 = vlaneseq
        %v338 = vshrl.u32 %v337, 7
        %v339 = vsub.s32 3, %v338
        %v340 = vrot.slane %v323, %v339
        %v349 = vunpack.c.l.b16 %v311
        %v350 = vunpack.c.l.b16 %v312
        %v351 = vunpack.c.l.b16 %v313
        %v352 = vunpack.c.l.b16 %v314
        %v353 = vpack.c.b16 %v350, %v349
        %v354 = vpack.c.b16 %v352, %v351
        %v363 = vunpack.c.l.b16 %v315
        %v364 = vunpack.c.h.b16 %v315
        %v365 = vunpack.c.l.b16 %v316
        %v366 = vunpack.c.h.b16 %v316
        %v367 = vunpack.c.l.b16 %v317
        %v368 = vunpack.c.h.b16 %v317
        %v369 = vunpack.c.l.b16 %v318
        %v370 = vunpack.c.h.b16 %v318
        %v371 = vunpack.c.l.b16 %v319
        %v372 = vunpack.c.h.b16 %v319
        %v373 = vunpack.c.l.b16 %v320
        %v374 = vunpack.c.h.b16 %v320
        %v375 = vunpack.c.l.b16 %v321
        %v376 = vunpack.c.h.b16 %v321
        %v377 = vunpack.c.l.b16 %v322
        %v378 = vunpack.c.h.b16 %v322
        %v379 = vpack.c.b16 %v367, %v363
        %v380 = vpack.c.b16 %v368, %v364
        %v381 = vpack.c.b16 %v369, %v365
        %v382 = vpack.c.b16 %v370, %v366
        %v383 = vpack.c.b16 %v375, %v371
        %v384 = vpack.c.b16 %v376, %v372
        %v385 = vpack.c.b16 %v377, %v373
        %v386 = vpack.c.b16 %v378, %v374
        %vm395 = vcmask 261120
        %v397 = vsel %vm395, %v353, 0
        %v400 = vsel %vm395, %v354, 0
        %402 = vmatprep.subr.bf16.mxu0 %v380
        %403 = vmatpush1.bf16.msra.mxu0 %v379
        %404 = vmatprep.subr.bf16.mxu0 %v384
        %405 = vmatpush1.bf16.msra.mxu0 %v383
        %406 = vmatprep.subr.bf16.mxu0 0
        %407 = vmatpush1.bf16.msra.mxu0 0
        %408 = vmatprep.subr.bf16.mxu0 0
        %409 = vmatpush1.bf16.msra.mxu0 0
        %410 = vmatprep.subr.bf16.mxu0 0
        %411 = vmatpush1.bf16.msra.mxu0 0
        %412 = vmatprep.subr.bf16.mxu0 0
        %413 = vmatpush1.bf16.msra.mxu0 0
        %414 = vmatprep.subr.bf16.mxu0 0
        %415 = vmatpush1.bf16.msra.mxu0 0
        %416 = vmatprep.subr.bf16.mxu0 0
        %417 = vmatpush1.bf16.msra.mxu0 0
        %418 = vmatprep.subr.bf16.mxu0 0
        %419 = vmatpush1.bf16.msra.mxu0 0
        %420 = vmatprep.subr.bf16.mxu0 0
        %421 = vmatpush1.bf16.msra.mxu0 0
        %422 = vmatprep.subr.bf16.mxu0 0
        %423 = vmatpush1.bf16.msra.mxu0 0
        %424 = vmatprep.subr.bf16.mxu0 0
        %425 = vmatpush1.bf16.msra.mxu0 0
        %426 = vmatprep.subr.bf16.mxu0 0
        %427 = vmatpush1.bf16.msra.mxu0 0
        %428 = vmatprep.subr.bf16.mxu0 0
        %429 = vmatpush1.bf16.msra.mxu0 0
        %430 = vmatprep.subr.bf16.mxu0 0
        %431 = vmatpush1.bf16.msra.mxu0 0
        %432 = vmatprep.subr.bf16.mxu0 0
        %433 = vmatpush1.bf16.msra.mxu0 0
        %434 = vmatprep.mubr.bf16.mxu0 0
        %435 = vmatmul.mubr.bf16.gmra.mrb[0].mxu0 %v397
        %v436 = vpop.f32.mrb[0].mxu0
        %v437 = vadd.f32 %v328, %v436
        %v438 = vpop.f32.mrb[0].mxu0
        %v439 = vadd.f32 %v332, %v438
        %v440 = vpop.f32.mrb[0].mxu0
        %v441 = vadd.f32 %v328, %v440
        %v442 = vpop.f32.mrb[0].mxu0
        %v443 = vadd.f32 %v332, %v442
        %444 = vmatprep.mubr.bf16.mxu0 0
        %445 = vmatmul.mubr.bf16.gmra.mrb[0].mxu0 %v400
        %v446 = vpop.f32.mrb[0].mxu0
        %v447 = vadd.f32 %v328, %v446
        %v448 = vpop.f32.mrb[0].mxu0
        %v449 = vadd.f32 %v332, %v448
        %v450 = vpop.f32.mrb[0].mxu0
        %v451 = vadd.f32 %v328, %v450
        %v452 = vpop.f32.mrb[0].mxu0
        %v453 = vadd.f32 %v332, %v452
        %454 = vdwg.mxu0
        %455 = vmatprep.subr.bf16.mxu0 %v382
        %456 = vmatpush1.bf16.msra.mxu0 %v381
        %457 = vmatprep.subr.bf16.mxu0 %v386
        %458 = vmatpush1.bf16.msra.mxu0 %v385
        %459 = vmatprep.subr.bf16.mxu0 0
        %460 = vmatpush1.bf16.msra.mxu0 0
        %461 = vmatprep.subr.bf16.mxu0 0
        %462 = vmatpush1.bf16.msra.mxu0 0
        %463 = vmatprep.subr.bf16.mxu0 0
        %464 = vmatpush1.bf16.msra.mxu0 0
        %465 = vmatprep.subr.bf16.mxu0 0
        %466 = vmatpush1.bf16.msra.mxu0 0
        %467 = vmatprep.subr.bf16.mxu0 0
        %468 = vmatpush1.bf16.msra.mxu0 0
        %469 = vmatprep.subr.bf16.mxu0 0
        %470 = vmatpush1.bf16.msra.mxu0 0
        %471 = vmatprep.subr.bf16.mxu0 0
        %472 = vmatpush1.bf16.msra.mxu0 0
        %473 = vmatprep.subr.bf16.mxu0 0
        %474 = vmatpush1.bf16.msra.mxu0 0
        %475 = vmatprep.subr.bf16.mxu0 0
        %476 = vmatpush1.bf16.msra.mxu0 0
        %477 = vmatprep.subr.bf16.mxu0 0
        %478 = vmatpush1.bf16.msra.mxu0 0
        %479 = vmatprep.subr.bf16.mxu0 0
        %480 = vmatpush1.bf16.msra.mxu0 0
        %481 = vmatprep.subr.bf16.mxu0 0
        %482 = vmatpush1.bf16.msra.mxu0 0
        %483 = vmatprep.subr.bf16.mxu0 0
        %484 = vmatpush1.bf16.msra.mxu0 0
        %485 = vmatprep.subr.bf16.mxu0 0
        %486 = vmatpush1.bf16.msra.mxu0 0
        %487 = vmatprep.mubr.bf16.mxu0 0
        %488 = vmatmul.mubr.bf16.gmra.mrb[0].mxu0 %v397
        %v489 = vpop.f32.mrb[0].mxu0
        %v490 = vadd.f32 %v336, %v489
        %v491 = vpop.f32.mrb[0].mxu0
        %v492 = vadd.f32 %v340, %v491
        %v493 = vpop.f32.mrb[0].mxu0
        %v494 = vadd.f32 %v336, %v493
        %v495 = vpop.f32.mrb[0].mxu0
        %v496 = vadd.f32 %v340, %v495
        %497 = vmatprep.mubr.bf16.mxu0 0
        %498 = vmatmul.mubr.bf16.gmra.mrb[0].mxu0 %v400
        %v499 = vpop.f32.mrb[0].mxu0
        %v500 = vadd.f32 %v336, %v499
        %v501 = vpop.f32.mrb[0].mxu0
        %v502 = vadd.f32 %v340, %v501
        %v503 = vpop.f32.mrb[0].mxu0
        %v504 = vadd.f32 %v336, %v503
        %v505 = vpop.f32.mrb[0].mxu0
        %v506 = vadd.f32 %v340, %v505
        %507 = vdwg.mxu0
        %v508 = vmax.f32 %v437, 0.0
        %v509 = vmax.f32 %v439, 0.0
        %v510 = vmax.f32 %v490, 0.0
        %v511 = vmax.f32 %v492, 0.0
        %v512 = vmax.f32 %v441, 0.0
        %v513 = vmax.f32 %v443, 0.0
        %v514 = vmax.f32 %v494, 0.0
        %v515 = vmax.f32 %v496, 0.0
        %v516 = vmax.f32 %v447, 0.0
        %v517 = vmax.f32 %v449, 0.0
        %v518 = vmax.f32 %v500, 0.0
        %v519 = vmax.f32 %v502, 0.0
        %v520 = vmax.f32 %v451, 0.0
        %v521 = vmax.f32 %v453, 0.0
        %v522 = vmax.f32 %v504, 0.0
        %v523 = vmax.f32 %v506, 0.0
        %v524 = vpack.c.bf16 %v512, %v508
        %v525 = vpack.c.bf16 %v513, %v509
        %v526 = vpack.c.bf16 %v514, %v510
        %v527 = vpack.c.bf16 %v515, %v511
        %v528 = vpack.c.bf16 %v520, %v516
        %v529 = vpack.c.bf16 %v521, %v517
        %v530 = vpack.c.bf16 %v522, %v518
        %v531 = vpack.c.bf16 %v523, %v519
        %v532 = vld [vmem:[%s261] sm:$0xff]
        %v533 = vld [vmem:[%s261 + $0x8] sm:$0xf]
        %v534 = vld [vmem:[%s261 + $0xc] sm:$0xff]
        %v535 = vld [vmem:[%s261 + $0x14] sm:$0xf]
        %v536 = vld [vmem:[%s261 + $0x18] sm:$0xff]
        %v537 = vld [vmem:[%s261 + $0x20] sm:$0xf]
        %v538 = vld [vmem:[%s261 + $0x24] sm:$0xff]
        %v539 = vld [vmem:[%s261 + $0x2c] sm:$0xf]
        %v540 = vld [vmem:[%s261 + $0x30] sm:$0xff]
        %v541 = vld [vmem:[%s261 + $0x38] sm:$0xf]
        %v542 = vld [vmem:[%s261 + $0x3c] sm:$0xff]
        %v543 = vld [vmem:[%s261 + $0x44] sm:$0xf]
        %v544 = vld [vmem:[%s261 + $0x48] sm:$0xff]
        %v545 = vld [vmem:[%s261 + $0x50] sm:$0xf]
        %v546 = vld [vmem:[%s261 + $0x54] sm:$0xff]
        %v547 = vld [vmem:[%s261 + $0x5c] sm:$0xf]
        %v548 = vld [vmem:[%s261 + $0x60] sm:$0xff]
        %v549 = vld [vmem:[%s261 + $0x68] sm:$0xf]
        %v550 = vld [vmem:[%s261 + $0x6c] sm:$0xff]
        %v551 = vld [vmem:[%s261 + $0x74] sm:$0xf]
        %v552 = vld [vmem:[%s261 + $0x78] sm:$0xff]
        %v553 = vld [vmem:[%s261 + $0x80] sm:$0xf]
        %v554 = vld [vmem:[%s261 + $0x84] sm:$0xff]
        %v555 = vld [vmem:[%s261 + $0x8c] sm:$0xf]
        %v556 = vld [vmem:[%s261 + $0x90] sm:$0xff]
        %v557 = vld [vmem:[%s261 + $0x98] sm:$0xf]
        %v558 = vld [vmem:[%s261 + $0x9c] sm:$0xff]
        %v559 = vld [vmem:[%s261 + $0xa4] sm:$0xf]
        %v560 = vld [vmem:[%s261 + $0xa8] sm:$0xff]
        %v561 = vld [vmem:[%s261 + $0xb0] sm:$0xf]
        %v562 = vld [vmem:[%s261 + $0xb4] sm:$0xff]
        %v563 = vld [vmem:[%s261 + $0xbc] sm:$0xf]
        %v564 = vld [vmem:[%s261 + $0xc0] sm:$0xff]
        %v565 = vld [vmem:[%s261 + $0xc8] sm:$0xf]
        %v566 = vld [vmem:[%s261 + $0xcc] sm:$0xff]
        %v567 = vld [vmem:[%s261 + $0xd4] sm:$0xf]
        %v568 = vld [vmem:[%s261 + $0xd8] sm:$0xff]
        %v569 = vld [vmem:[%s261 + $0xe0] sm:$0xf]
        %v570 = vld [vmem:[%s261 + $0xe4] sm:$0xff]
        %v571 = vld [vmem:[%s261 + $0xec] sm:$0xf]
        %v572 = vld [vmem:[%s261 + $0xf0] sm:$0xff]
        %v573 = vld [vmem:[%s261 + $0xf8] sm:$0xf]
        %v574 = vld [vmem:[%s261 + $0xfc] sm:$0xff]
        %v575 = vld [vmem:[%s261 + $0x104] sm:$0xf]
        %v576 = vld [vmem:[%s261 + $0x108] sm:$0xff]
        %v577 = vld [vmem:[%s261 + $0x110] sm:$0xf]
        %v578 = vld [vmem:[%s261 + $0x114] sm:$0xff]
        %v579 = vld [vmem:[%s261 + $0x11c] sm:$0xf]
        %v580 = vld [vmem:[%s261 + $0x120] sm:$0xff]
        %v581 = vld [vmem:[%s261 + $0x128] sm:$0xf]
        %v582 = vld [vmem:[%s261 + $0x12c] sm:$0xff]
        %v583 = vld [vmem:[%s261 + $0x134] sm:$0xf]
        %v584 = vld [vmem:[%s261 + $0x138] sm:$0xff]
        %v585 = vld [vmem:[%s261 + $0x140] sm:$0xf]
        %v586 = vld [vmem:[%s261 + $0x144] sm:$0xff]
        %v587 = vld [vmem:[%s261 + $0x14c] sm:$0xf]
        %v588 = vld [vmem:[%s261 + $0x150] sm:$0xff]
        %v589 = vld [vmem:[%s261 + $0x158] sm:$0xf]
        %v590 = vld [vmem:[%s261 + $0x15c] sm:$0xff]
        %v591 = vld [vmem:[%s261 + $0x164] sm:$0xf]
        %v592 = vld [vmem:[%s261 + $0x168] sm:$0xff]
        %v593 = vld [vmem:[%s261 + $0x170] sm:$0xf]
        %v594 = vld [vmem:[%s261 + $0x174] sm:$0xff]
        %v595 = vld [vmem:[%s261 + $0x17c] sm:$0xf]
        %v596 = vld [vmem:[%s261 + $0x180] sm:$0xff]
        %v597 = vld [vmem:[%s261 + $0x188] sm:$0xf]
        %v598 = vld [vmem:[%s261 + $0x18c] sm:$0xff]
        %v599 = vld [vmem:[%s261 + $0x194] sm:$0xf]
        %v600 = vld [vmem:[%s261 + $0x198] sm:$0xff]
        %v601 = vld [vmem:[%s261 + $0x1a0] sm:$0xf]
        %v602 = vld [vmem:[%s261 + $0x1a4] sm:$0xff]
        %v603 = vld [vmem:[%s261 + $0x1ac] sm:$0xf]
        %v604 = vld [vmem:[%s261 + $0x1b0] sm:$0xff]
        %v605 = vld [vmem:[%s261 + $0x1b8] sm:$0xf]
        %v606 = vld [vmem:[%s261 + $0x1bc] sm:$0xff]
        %v607 = vld [vmem:[%s261 + $0x1c4] sm:$0xf]
        %v608 = vld [vmem:[%s261 + $0x1c8] sm:$0xff]
        %v609 = vld [vmem:[%s261 + $0x1d0] sm:$0xf]
        %v610 = vld [vmem:[%s261 + $0x1d4] sm:$0xff]
        %v611 = vld [vmem:[%s261 + $0x1dc] sm:$0xf]
        %v612 = vld [vmem:[%s261 + $0x1e0] sm:$0xff]
        %v613 = vld [vmem:[%s261 + $0x1e8] sm:$0xf]
        %v614 = vld [vmem:[%s261 + $0x1ec] sm:$0xff]
        %v615 = vld [vmem:[%s261 + $0x1f4] sm:$0xf]
        %v616 = vld [vmem:[%s261 + $0x1f8] sm:$0xff]
        %v617 = vld [vmem:[%s261 + $0x200] sm:$0xf]
        %v618 = vld [vmem:[%s261 + $0x204] sm:$0xff]
        %v619 = vld [vmem:[%s261 + $0x20c] sm:$0xf]
        %v620 = vld [vmem:[%s261 + $0x210] sm:$0xff]
        %v621 = vld [vmem:[%s261 + $0x218] sm:$0xf]
        %v622 = vld [vmem:[%s261 + $0x21c] sm:$0xff]
        %v623 = vld [vmem:[%s261 + $0x224] sm:$0xf]
        %v624 = vld [vmem:[%s261 + $0x228] sm:$0xff]
        %v625 = vld [vmem:[%s261 + $0x230] sm:$0xf]
        %v626 = vld [vmem:[%s261 + $0x234] sm:$0xff]
        %v627 = vld [vmem:[%s261 + $0x23c] sm:$0xf]
        %v628 = vld [vmem:[%s261 + $0x240] sm:$0xff]
        %v629 = vld [vmem:[%s261 + $0x248] sm:$0xf]
        %v630 = vld [vmem:[%s261 + $0x24c] sm:$0xff]
        %v631 = vld [vmem:[%s261 + $0x254] sm:$0xf]
        %v632 = vld [vmem:[%s261 + $0x258] sm:$0xff]
        %v633 = vld [vmem:[%s261 + $0x260] sm:$0xf]
        %v634 = vld [vmem:[%s261 + $0x264] sm:$0xff]
        %v635 = vld [vmem:[%s261 + $0x26c] sm:$0xf]
        %v636 = vld [vmem:[%s261 + $0x270] sm:$0xff]
        %v637 = vld [vmem:[%s261 + $0x278] sm:$0xf]
        %v638 = vld [vmem:[%s261 + $0x27c] sm:$0xff]
        %v639 = vld [vmem:[%s261 + $0x284] sm:$0xf]
        %v640 = vld [vmem:[%s261 + $0x288] sm:$0xff]
        %v641 = vld [vmem:[%s261 + $0x290] sm:$0xf]
        %v642 = vld [vmem:[%s261 + $0x294] sm:$0xff]
        %v643 = vld [vmem:[%s261 + $0x29c] sm:$0xf]
        %v644 = vld [vmem:[%s261 + $0x2a0] sm:$0xff]
        %v645 = vld [vmem:[%s261 + $0x2a8] sm:$0xf]
        %v646 = vld [vmem:[%s261 + $0x2ac] sm:$0xff]
        %v647 = vld [vmem:[%s261 + $0x2b4] sm:$0xf]
        %v648 = vld [vmem:[%s261 + $0x2b8] sm:$0xff]
        %v649 = vld [vmem:[%s261 + $0x2c0] sm:$0xf]
        %v650 = vld [vmem:[%s261 + $0x2c4] sm:$0xff]
        %v651 = vld [vmem:[%s261 + $0x2cc] sm:$0xf]
        %v652 = vld [vmem:[%s261 + $0x2d0] sm:$0xff]
        %v653 = vld [vmem:[%s261 + $0x2d8] sm:$0xf]
        %v654 = vld [vmem:[%s261 + $0x2dc] sm:$0xff]
        %v655 = vld [vmem:[%s261 + $0x2e4] sm:$0xf]
        %v656 = vld [vmem:[%s261 + $0x2e8] sm:$0xff]
        %v657 = vld [vmem:[%s261 + $0x2f0] sm:$0xf]
        %v658 = vld [vmem:[%s261 + $0x2f4] sm:$0xff]
        %v659 = vld [vmem:[%s261 + $0x2fc] sm:$0xf]
        %v660 = vld [vmem:[%s306] sm:$0x7]
        %v662 = vlaneseq
        %v663 = vshrl.u32 %v662, 7
        %v664 = vsub.s32 0, %v663
        %v665 = vrot.slane %v660, %v664
        %v666 = vlaneseq
        %v667 = vshrl.u32 %v666, 7
        %v668 = vsub.s32 1, %v667
        %v669 = vrot.slane %v660, %v668
        %v670 = vlaneseq
        %v671 = vshrl.u32 %v670, 7
        %v672 = vsub.s32 2, %v671
        %v673 = vrot.slane %v660, %v672
        %v805 = vunpack.c.l.b16 %v532
        %v806 = vunpack.c.h.b16 %v532
        %v807 = vunpack.c.l.b16 %v533
        %v808 = vunpack.c.l.b16 %v534
        %v809 = vunpack.c.h.b16 %v534
        %v810 = vunpack.c.l.b16 %v535
        %v811 = vunpack.c.l.b16 %v536
        %v812 = vunpack.c.h.b16 %v536
        %v813 = vunpack.c.l.b16 %v537
        %v814 = vunpack.c.l.b16 %v538
        %v815 = vunpack.c.h.b16 %v538
        %v816 = vunpack.c.l.b16 %v539
        %v817 = vunpack.c.l.b16 %v540
        %v818 = vunpack.c.h.b16 %v540
        %v819 = vunpack.c.l.b16 %v541
        %v820 = vunpack.c.l.b16 %v542
        %v821 = vunpack.c.h.b16 %v542
        %v822 = vunpack.c.l.b16 %v543
        %v823 = vunpack.c.l.b16 %v544
        %v824 = vunpack.c.h.b16 %v544
        %v825 = vunpack.c.l.b16 %v545
        %v826 = vunpack.c.l.b16 %v546
        %v827 = vunpack.c.h.b16 %v546
        %v828 = vunpack.c.l.b16 %v547
        %v829 = vunpack.c.l.b16 %v548
        %v830 = vunpack.c.h.b16 %v548
        %v831 = vunpack.c.l.b16 %v549
        %v832 = vunpack.c.l.b16 %v550
        %v833 = vunpack.c.h.b16 %v550
        %v834 = vunpack.c.l.b16 %v551
        %v835 = vunpack.c.l.b16 %v552
        %v836 = vunpack.c.h.b16 %v552
        %v837 = vunpack.c.l.b16 %v553
        %v838 = vunpack.c.l.b16 %v554
        %v839 = vunpack.c.h.b16 %v554
        %v840 = vunpack.c.l.b16 %v555
        %v841 = vunpack.c.l.b16 %v556
        %v842 = vunpack.c.h.b16 %v556
        %v843 = vunpack.c.l.b16 %v557
        %v844 = vunpack.c.l.b16 %v558
        %v845 = vunpack.c.h.b16 %v558
        %v846 = vunpack.c.l.b16 %v559
        %v847 = vunpack.c.l.b16 %v560
        %v848 = vunpack.c.h.b16 %v560
        %v849 = vunpack.c.l.b16 %v561
        %v850 = vunpack.c.l.b16 %v562
        %v851 = vunpack.c.h.b16 %v562
        %v852 = vunpack.c.l.b16 %v563
        %v853 = vunpack.c.l.b16 %v564
        %v854 = vunpack.c.h.b16 %v564
        %v855 = vunpack.c.l.b16 %v565
        %v856 = vunpack.c.l.b16 %v566
        %v857 = vunpack.c.h.b16 %v566
        %v858 = vunpack.c.l.b16 %v567
        %v859 = vunpack.c.l.b16 %v568
        %v860 = vunpack.c.h.b16 %v568
        %v861 = vunpack.c.l.b16 %v569
        %v862 = vunpack.c.l.b16 %v570
        %v863 = vunpack.c.h.b16 %v570
        %v864 = vunpack.c.l.b16 %v571
        %v865 = vunpack.c.l.b16 %v572
        %v866 = vunpack.c.h.b16 %v572
        %v867 = vunpack.c.l.b16 %v573
        %v868 = vunpack.c.l.b16 %v574
        %v869 = vunpack.c.h.b16 %v574
        %v870 = vunpack.c.l.b16 %v575
        %v871 = vunpack.c.l.b16 %v576
        %v872 = vunpack.c.h.b16 %v576
        %v873 = vunpack.c.l.b16 %v577
        %v874 = vunpack.c.l.b16 %v578
        %v875 = vunpack.c.h.b16 %v578
        %v876 = vunpack.c.l.b16 %v579
        %v877 = vunpack.c.l.b16 %v580
        %v878 = vunpack.c.h.b16 %v580
        %v879 = vunpack.c.l.b16 %v581
        %v880 = vunpack.c.l.b16 %v582
        %v881 = vunpack.c.h.b16 %v582
        %v882 = vunpack.c.l.b16 %v583
        %v883 = vunpack.c.l.b16 %v584
        %v884 = vunpack.c.h.b16 %v584
        %v885 = vunpack.c.l.b16 %v585
        %v886 = vunpack.c.l.b16 %v586
        %v887 = vunpack.c.h.b16 %v586
        %v888 = vunpack.c.l.b16 %v587
        %v889 = vunpack.c.l.b16 %v588
        %v890 = vunpack.c.h.b16 %v588
        %v891 = vunpack.c.l.b16 %v589
        %v892 = vunpack.c.l.b16 %v590
        %v893 = vunpack.c.h.b16 %v590
        %v894 = vunpack.c.l.b16 %v591
        %v895 = vunpack.c.l.b16 %v592
        %v896 = vunpack.c.h.b16 %v592
        %v897 = vunpack.c.l.b16 %v593
        %v898 = vunpack.c.l.b16 %v594
        %v899 = vunpack.c.h.b16 %v594
        %v900 = vunpack.c.l.b16 %v595
        %v901 = vunpack.c.l.b16 %v596
        %v902 = vunpack.c.h.b16 %v596
        %v903 = vunpack.c.l.b16 %v597
        %v904 = vunpack.c.l.b16 %v598
        %v905 = vunpack.c.h.b16 %v598
        %v906 = vunpack.c.l.b16 %v599
        %v907 = vunpack.c.l.b16 %v600
        %v908 = vunpack.c.h.b16 %v600
        %v909 = vunpack.c.l.b16 %v601
        %v910 = vunpack.c.l.b16 %v602
        %v911 = vunpack.c.h.b16 %v602
        %v912 = vunpack.c.l.b16 %v603
        %v913 = vunpack.c.l.b16 %v604
        %v914 = vunpack.c.h.b16 %v604
        %v915 = vunpack.c.l.b16 %v605
        %v916 = vunpack.c.l.b16 %v606
        %v917 = vunpack.c.h.b16 %v606
        %v918 = vunpack.c.l.b16 %v607
        %v919 = vunpack.c.l.b16 %v608
        %v920 = vunpack.c.h.b16 %v608
        %v921 = vunpack.c.l.b16 %v609
        %v922 = vunpack.c.l.b16 %v610
        %v923 = vunpack.c.h.b16 %v610
        %v924 = vunpack.c.l.b16 %v611
        %v925 = vunpack.c.l.b16 %v612
        %v926 = vunpack.c.h.b16 %v612
        %v927 = vunpack.c.l.b16 %v613
        %v928 = vunpack.c.l.b16 %v614
        %v929 = vunpack.c.h.b16 %v614
        %v930 = vunpack.c.l.b16 %v615
        %v931 = vunpack.c.l.b16 %v616
        %v932 = vunpack.c.h.b16 %v616
        %v933 = vunpack.c.l.b16 %v617
        %v934 = vunpack.c.l.b16 %v618
        %v935 = vunpack.c.h.b16 %v618
        %v936 = vunpack.c.l.b16 %v619
        %v937 = vunpack.c.l.b16 %v620
        %v938 = vunpack.c.h.b16 %v620
        %v939 = vunpack.c.l.b16 %v621
        %v940 = vunpack.c.l.b16 %v622
        %v941 = vunpack.c.h.b16 %v622
        %v942 = vunpack.c.l.b16 %v623
        %v943 = vunpack.c.l.b16 %v624
        %v944 = vunpack.c.h.b16 %v624
        %v945 = vunpack.c.l.b16 %v625
        %v946 = vunpack.c.l.b16 %v626
        %v947 = vunpack.c.h.b16 %v626
        %v948 = vunpack.c.l.b16 %v627
        %v949 = vunpack.c.l.b16 %v628
        %v950 = vunpack.c.h.b16 %v628
        %v951 = vunpack.c.l.b16 %v629
        %v952 = vunpack.c.l.b16 %v630
        %v953 = vunpack.c.h.b16 %v630
        %v954 = vunpack.c.l.b16 %v631
        %v955 = vunpack.c.l.b16 %v632
        %v956 = vunpack.c.h.b16 %v632
        %v957 = vunpack.c.l.b16 %v633
        %v958 = vunpack.c.l.b16 %v634
        %v959 = vunpack.c.h.b16 %v634
        %v960 = vunpack.c.l.b16 %v635
        %v961 = vunpack.c.l.b16 %v636
        %v962 = vunpack.c.h.b16 %v636
        %v963 = vunpack.c.l.b16 %v637
        %v964 = vunpack.c.l.b16 %v638
        %v965 = vunpack.c.h.b16 %v638
        %v966 = vunpack.c.l.b16 %v639
        %v967 = vunpack.c.l.b16 %v640
        %v968 = vunpack.c.h.b16 %v640
        %v969 = vunpack.c.l.b16 %v641
        %v970 = vunpack.c.l.b16 %v642
        %v971 = vunpack.c.h.b16 %v642
        %v972 = vunpack.c.l.b16 %v643
        %v973 = vunpack.c.l.b16 %v644
        %v974 = vunpack.c.h.b16 %v644
        %v975 = vunpack.c.l.b16 %v645
        %v976 = vunpack.c.l.b16 %v646
        %v977 = vunpack.c.h.b16 %v646
        %v978 = vunpack.c.l.b16 %v647
        %v979 = vunpack.c.l.b16 %v648
        %v980 = vunpack.c.h.b16 %v648
        %v981 = vunpack.c.l.b16 %v649
        %v982 = vunpack.c.l.b16 %v650
        %v983 = vunpack.c.h.b16 %v650
        %v984 = vunpack.c.l.b16 %v651
        %v985 = vunpack.c.l.b16 %v652
        %v986 = vunpack.c.h.b16 %v652
        %v987 = vunpack.c.l.b16 %v653
        %v988 = vunpack.c.l.b16 %v654
        %v989 = vunpack.c.h.b16 %v654
        %v990 = vunpack.c.l.b16 %v655
        %v991 = vunpack.c.l.b16 %v656
        %v992 = vunpack.c.h.b16 %v656
        %v993 = vunpack.c.l.b16 %v657
        %v994 = vunpack.c.l.b16 %v658
        %v995 = vunpack.c.h.b16 %v658
        %v996 = vunpack.c.l.b16 %v659
        %v997 = vpack.c.b16 %v808, %v805
        %v998 = vpack.c.b16 %v809, %v806
        %v999 = vpack.c.b16 %v810, %v807
        %v1000 = vpack.c.b16 %v814, %v811
        %v1001 = vpack.c.b16 %v815, %v812
        %v1002 = vpack.c.b16 %v816, %v813
        %v1003 = vpack.c.b16 %v820, %v817
        %v1004 = vpack.c.b16 %v821, %v818
        %v1005 = vpack.c.b16 %v822, %v819
        %v1006 = vpack.c.b16 %v826, %v823
        %v1007 = vpack.c.b16 %v827, %v824
        %v1008 = vpack.c.b16 %v828, %v825
        %v1009 = vpack.c.b16 %v832, %v829
        %v1010 = vpack.c.b16 %v833, %v830
        %v1011 = vpack.c.b16 %v834, %v831
        %v1012 = vpack.c.b16 %v838, %v835
        %v1013 = vpack.c.b16 %v839, %v836
        %v1014 = vpack.c.b16 %v840, %v837
        %v1015 = vpack.c.b16 %v844, %v841
        %v1016 = vpack.c.b16 %v845, %v842
        %v1017 = vpack.c.b16 %v846, %v843
        %v1018 = vpack.c.b16 %v850, %v847
        %v1019 = vpack.c.b16 %v851, %v848
        %v1020 = vpack.c.b16 %v852, %v849
        %v1021 = vpack.c.b16 %v856, %v853
        %v1022 = vpack.c.b16 %v857, %v854
        %v1023 = vpack.c.b16 %v858, %v855
        %v1024 = vpack.c.b16 %v862, %v859
        %v1025 = vpack.c.b16 %v863, %v860
        %v1026 = vpack.c.b16 %v864, %v861
        %v1027 = vpack.c.b16 %v868, %v865
        %v1028 = vpack.c.b16 %v869, %v866
        %v1029 = vpack.c.b16 %v870, %v867
        %v1030 = vpack.c.b16 %v874, %v871
        %v1031 = vpack.c.b16 %v875, %v872
        %v1032 = vpack.c.b16 %v876, %v873
        %v1033 = vpack.c.b16 %v880, %v877
        %v1034 = vpack.c.b16 %v881, %v878
        %v1035 = vpack.c.b16 %v882, %v879
        %v1036 = vpack.c.b16 %v886, %v883
        %v1037 = vpack.c.b16 %v887, %v884
        %v1038 = vpack.c.b16 %v888, %v885
        %v1039 = vpack.c.b16 %v892, %v889
        %v1040 = vpack.c.b16 %v893, %v890
        %v1041 = vpack.c.b16 %v894, %v891
        %v1042 = vpack.c.b16 %v898, %v895
        %v1043 = vpack.c.b16 %v899, %v896
        %v1044 = vpack.c.b16 %v900, %v897
        %v1045 = vpack.c.b16 %v904, %v901
        %v1046 = vpack.c.b16 %v905, %v902
        %v1047 = vpack.c.b16 %v906, %v903
        %v1048 = vpack.c.b16 %v910, %v907
        %v1049 = vpack.c.b16 %v911, %v908
        %v1050 = vpack.c.b16 %v912, %v909
        %v1051 = vpack.c.b16 %v916, %v913
        %v1052 = vpack.c.b16 %v917, %v914
        %v1053 = vpack.c.b16 %v918, %v915
        %v1054 = vpack.c.b16 %v922, %v919
        %v1055 = vpack.c.b16 %v923, %v920
        %v1056 = vpack.c.b16 %v924, %v921
        %v1057 = vpack.c.b16 %v928, %v925
        %v1058 = vpack.c.b16 %v929, %v926
        %v1059 = vpack.c.b16 %v930, %v927
        %v1060 = vpack.c.b16 %v934, %v931
        %v1061 = vpack.c.b16 %v935, %v932
        %v1062 = vpack.c.b16 %v936, %v933
        %v1063 = vpack.c.b16 %v940, %v937
        %v1064 = vpack.c.b16 %v941, %v938
        %v1065 = vpack.c.b16 %v942, %v939
        %v1066 = vpack.c.b16 %v946, %v943
        %v1067 = vpack.c.b16 %v947, %v944
        %v1068 = vpack.c.b16 %v948, %v945
        %v1069 = vpack.c.b16 %v952, %v949
        %v1070 = vpack.c.b16 %v953, %v950
        %v1071 = vpack.c.b16 %v954, %v951
        %v1072 = vpack.c.b16 %v958, %v955
        %v1073 = vpack.c.b16 %v959, %v956
        %v1074 = vpack.c.b16 %v960, %v957
        %v1075 = vpack.c.b16 %v964, %v961
        %v1076 = vpack.c.b16 %v965, %v962
        %v1077 = vpack.c.b16 %v966, %v963
        %v1078 = vpack.c.b16 %v970, %v967
        %v1079 = vpack.c.b16 %v971, %v968
        %v1080 = vpack.c.b16 %v972, %v969
        %v1081 = vpack.c.b16 %v976, %v973
        %v1082 = vpack.c.b16 %v977, %v974
        %v1083 = vpack.c.b16 %v978, %v975
        %v1084 = vpack.c.b16 %v982, %v979
        %v1085 = vpack.c.b16 %v983, %v980
        %v1086 = vpack.c.b16 %v984, %v981
        %v1087 = vpack.c.b16 %v988, %v985
        %v1088 = vpack.c.b16 %v989, %v986
        %v1089 = vpack.c.b16 %v990, %v987
        %v1090 = vpack.c.b16 %v994, %v991
        %v1091 = vpack.c.b16 %v995, %v992
        %v1092 = vpack.c.b16 %v996, %v993
        %1189 = vmatprep.subr.bf16.mxu0 %v998
        %1190 = vmatpush1.bf16.msra.mxu0 %v997
        %1191 = vmatprep.subr.bf16.mxu0 %v1001
        %1192 = vmatpush1.bf16.msra.mxu0 %v1000
        %1193 = vmatprep.subr.bf16.mxu0 %v1004
        %1194 = vmatpush1.bf16.msra.mxu0 %v1003
        %1195 = vmatprep.subr.bf16.mxu0 %v1007
        %1196 = vmatpush1.bf16.msra.mxu0 %v1006
        %1197 = vmatprep.subr.bf16.mxu0 %v1010
        %1198 = vmatpush1.bf16.msra.mxu0 %v1009
        %1199 = vmatprep.subr.bf16.mxu0 %v1013
        %1200 = vmatpush1.bf16.msra.mxu0 %v1012
        %1201 = vmatprep.subr.bf16.mxu0 %v1016
        %1202 = vmatpush1.bf16.msra.mxu0 %v1015
        %1203 = vmatprep.subr.bf16.mxu0 %v1019
        %1204 = vmatpush1.bf16.msra.mxu0 %v1018
        %1205 = vmatprep.subr.bf16.mxu0 %v1022
        %1206 = vmatpush1.bf16.msra.mxu0 %v1021
        %1207 = vmatprep.subr.bf16.mxu0 %v1025
        %1208 = vmatpush1.bf16.msra.mxu0 %v1024
        %1209 = vmatprep.subr.bf16.mxu0 %v1028
        %1210 = vmatpush1.bf16.msra.mxu0 %v1027
        %1211 = vmatprep.subr.bf16.mxu0 %v1031
        %1212 = vmatpush1.bf16.msra.mxu0 %v1030
        %1213 = vmatprep.subr.bf16.mxu0 %v1034
        %1214 = vmatpush1.bf16.msra.mxu0 %v1033
        %1215 = vmatprep.subr.bf16.mxu0 %v1037
        %1216 = vmatpush1.bf16.msra.mxu0 %v1036
        %1217 = vmatprep.subr.bf16.mxu0 %v1040
        %1218 = vmatpush1.bf16.msra.mxu0 %v1039
        %1219 = vmatprep.subr.bf16.mxu0 %v1043
        %1220 = vmatpush1.bf16.msra.mxu0 %v1042
        %1221 = vmatprep.mubr.bf16.mxu0 %v525
        %1222 = vmatmul.mubr.bf16.gmra.mrb[0].mxu0 %v524
        %v1223 = vpop.f32.mrb[0].mxu0
        %v1224 = vadd.f32 %v665, %v1223
        %v1225 = vpop.f32.mrb[0].mxu0
        %v1226 = vadd.f32 %v669, %v1225
        %v1227 = vpop.f32.mrb[0].mxu0
        %v1228 = vadd.f32 %v665, %v1227
        %v1229 = vpop.f32.mrb[0].mxu0
        %v1230 = vadd.f32 %v669, %v1229
        %1231 = vmatprep.mubr.bf16.mxu0 %v529
        %1232 = vmatmul.mubr.bf16.gmra.mrb[0].mxu0 %v528
        %v1233 = vpop.f32.mrb[0].mxu0
        %v1234 = vadd.f32 %v665, %v1233
        %v1235 = vpop.f32.mrb[0].mxu0
        %v1236 = vadd.f32 %v669, %v1235
        %v1237 = vpop.f32.mrb[0].mxu0
        %v1238 = vadd.f32 %v665, %v1237
        %v1239 = vpop.f32.mrb[0].mxu0
        %v1240 = vadd.f32 %v669, %v1239
        %1241 = vdwg.mxu0
        %1242 = vmatprep.subr.bf16.mxu0 %v1046
        %1243 = vmatpush1.bf16.msra.mxu0 %v1045
        %1244 = vmatprep.subr.bf16.mxu0 %v1049
        %1245 = vmatpush1.bf16.msra.mxu0 %v1048
        %1246 = vmatprep.subr.bf16.mxu0 %v1052
        %1247 = vmatpush1.bf16.msra.mxu0 %v1051
        %1248 = vmatprep.subr.bf16.mxu0 %v1055
        %1249 = vmatpush1.bf16.msra.mxu0 %v1054
        %1250 = vmatprep.subr.bf16.mxu0 %v1058
        %1251 = vmatpush1.bf16.msra.mxu0 %v1057
        %1252 = vmatprep.subr.bf16.mxu0 %v1061
        %1253 = vmatpush1.bf16.msra.mxu0 %v1060
        %1254 = vmatprep.subr.bf16.mxu0 %v1064
        %1255 = vmatpush1.bf16.msra.mxu0 %v1063
        %1256 = vmatprep.subr.bf16.mxu0 %v1067
        %1257 = vmatpush1.bf16.msra.mxu0 %v1066
        %1258 = vmatprep.subr.bf16.mxu0 %v1070
        %1259 = vmatpush1.bf16.msra.mxu0 %v1069
        %1260 = vmatprep.subr.bf16.mxu0 %v1073
        %1261 = vmatpush1.bf16.msra.mxu0 %v1072
        %1262 = vmatprep.subr.bf16.mxu0 %v1076
        %1263 = vmatpush1.bf16.msra.mxu0 %v1075
        %1264 = vmatprep.subr.bf16.mxu0 %v1079
        %1265 = vmatpush1.bf16.msra.mxu0 %v1078
        %1266 = vmatprep.subr.bf16.mxu0 %v1082
        %1267 = vmatpush1.bf16.msra.mxu0 %v1081
        %1268 = vmatprep.subr.bf16.mxu0 %v1085
        %1269 = vmatpush1.bf16.msra.mxu0 %v1084
        %1270 = vmatprep.subr.bf16.mxu0 %v1088
        %1271 = vmatpush1.bf16.msra.mxu0 %v1087
        %1272 = vmatprep.subr.bf16.mxu0 %v1091
        %1273 = vmatpush1.bf16.msra.mxu0 %v1090
        %1274 = vmatprep.mubr.bf16.mxu0 %v527
        %1275 = vmatmul.mubr.bf16.gmra.mrb[0].mxu0 %v526
        %v1276 = vpop.f32.mrb[0].mxu0
        %v1277 = vadd.f32 %v1224, %v1276
        %v1278 = vpop.f32.mrb[0].mxu0
        %v1279 = vadd.f32 %v1226, %v1278
        %v1280 = vpop.f32.mrb[0].mxu0
        %v1281 = vadd.f32 %v1228, %v1280
        %v1282 = vpop.f32.mrb[0].mxu0
        %v1283 = vadd.f32 %v1230, %v1282
        %1284 = vmatprep.mubr.bf16.mxu0 %v531
        %1285 = vmatmul.mubr.bf16.gmra.mrb[0].mxu0 %v530
        %v1286 = vpop.f32.mrb[0].mxu0
        %v1287 = vadd.f32 %v1234, %v1286
        %v1288 = vpop.f32.mrb[0].mxu0
        %v1289 = vadd.f32 %v1236, %v1288
        %v1290 = vpop.f32.mrb[0].mxu0
        %v1291 = vadd.f32 %v1238, %v1290
        %v1292 = vpop.f32.mrb[0].mxu0
        %v1293 = vadd.f32 %v1240, %v1292
        %1294 = vdwg.mxu0
        %1295 = vmatprep.subr.bf16.mxu0 0
        %1296 = vmatpush1.bf16.msra.mxu0 %v999
        %1297 = vmatprep.subr.bf16.mxu0 0
        %1298 = vmatpush1.bf16.msra.mxu0 %v1002
        %1299 = vmatprep.subr.bf16.mxu0 0
        %1300 = vmatpush1.bf16.msra.mxu0 %v1005
        %1301 = vmatprep.subr.bf16.mxu0 0
        %1302 = vmatpush1.bf16.msra.mxu0 %v1008
        %1303 = vmatprep.subr.bf16.mxu0 0
        %1304 = vmatpush1.bf16.msra.mxu0 %v1011
        %1305 = vmatprep.subr.bf16.mxu0 0
        %1306 = vmatpush1.bf16.msra.mxu0 %v1014
        %1307 = vmatprep.subr.bf16.mxu0 0
        %1308 = vmatpush1.bf16.msra.mxu0 %v1017
        %1309 = vmatprep.subr.bf16.mxu0 0
        %1310 = vmatpush1.bf16.msra.mxu0 %v1020
        %1311 = vmatprep.subr.bf16.mxu0 0
        %1312 = vmatpush1.bf16.msra.mxu0 %v1023
        %1313 = vmatprep.subr.bf16.mxu0 0
        %1314 = vmatpush1.bf16.msra.mxu0 %v1026
        %1315 = vmatprep.subr.bf16.mxu0 0
        %1316 = vmatpush1.bf16.msra.mxu0 %v1029
        %1317 = vmatprep.subr.bf16.mxu0 0
        %1318 = vmatpush1.bf16.msra.mxu0 %v1032
        %1319 = vmatprep.subr.bf16.mxu0 0
        %1320 = vmatpush1.bf16.msra.mxu0 %v1035
        %1321 = vmatprep.subr.bf16.mxu0 0
        %1322 = vmatpush1.bf16.msra.mxu0 %v1038
        %1323 = vmatprep.subr.bf16.mxu0 0
        %1324 = vmatpush1.bf16.msra.mxu0 %v1041
        %1325 = vmatprep.subr.bf16.mxu0 0
        %1326 = vmatpush1.bf16.msra.mxu0 %v1044
        %1327 = vmatprep.mubr.bf16.mxu0 %v525
        %1328 = vmatmul.mubr.bf16.gmra.mrb[0].mxu0 %v524
        %v1329 = vpop.f32.mrb[0].mxu0
        %v1330 = vadd.f32 %v673, %v1329
        %v1331 = vpop.f32.mrb[0].mxu0
        %v1332 = vpop.f32.mrb[0].mxu0
        %v1333 = vadd.f32 %v673, %v1332
        %v1334 = vpop.f32.mrb[0].mxu0
        %1335 = vmatprep.mubr.bf16.mxu0 %v529
        %1336 = vmatmul.mubr.bf16.gmra.mrb[0].mxu0 %v528
        %v1337 = vpop.f32.mrb[0].mxu0
        %v1338 = vadd.f32 %v673, %v1337
        %v1339 = vpop.f32.mrb[0].mxu0
        %v1340 = vpop.f32.mrb[0].mxu0
        %v1341 = vadd.f32 %v673, %v1340
        %v1342 = vpop.f32.mrb[0].mxu0
        %1343 = vdwg.mxu0
        %1344 = vmatprep.subr.bf16.mxu0 0
        %1345 = vmatpush1.bf16.msra.mxu0 %v1047
        %1346 = vmatprep.subr.bf16.mxu0 0
        %1347 = vmatpush1.bf16.msra.mxu0 %v1050
        %1348 = vmatprep.subr.bf16.mxu0 0
        %1349 = vmatpush1.bf16.msra.mxu0 %v1053
        %1350 = vmatprep.subr.bf16.mxu0 0
        %1351 = vmatpush1.bf16.msra.mxu0 %v1056
        %1352 = vmatprep.subr.bf16.mxu0 0
        %1353 = vmatpush1.bf16.msra.mxu0 %v1059
        %1354 = vmatprep.subr.bf16.mxu0 0
        %1355 = vmatpush1.bf16.msra.mxu0 %v1062
        %1356 = vmatprep.subr.bf16.mxu0 0
        %1357 = vmatpush1.bf16.msra.mxu0 %v1065
        %1358 = vmatprep.subr.bf16.mxu0 0
        %1359 = vmatpush1.bf16.msra.mxu0 %v1068
        %1360 = vmatprep.subr.bf16.mxu0 0
        %1361 = vmatpush1.bf16.msra.mxu0 %v1071
        %1362 = vmatprep.subr.bf16.mxu0 0
        %1363 = vmatpush1.bf16.msra.mxu0 %v1074
        %1364 = vmatprep.subr.bf16.mxu0 0
        %1365 = vmatpush1.bf16.msra.mxu0 %v1077
        %1366 = vmatprep.subr.bf16.mxu0 0
        %1367 = vmatpush1.bf16.msra.mxu0 %v1080
        %1368 = vmatprep.subr.bf16.mxu0 0
        %1369 = vmatpush1.bf16.msra.mxu0 %v1083
        %1370 = vmatprep.subr.bf16.mxu0 0
        %1371 = vmatpush1.bf16.msra.mxu0 %v1086
        %1372 = vmatprep.subr.bf16.mxu0 0
        %1373 = vmatpush1.bf16.msra.mxu0 %v1089
        %1374 = vmatprep.subr.bf16.mxu0 0
        %1375 = vmatpush1.bf16.msra.mxu0 %v1092
        %1376 = vmatprep.mubr.bf16.mxu0 %v527
        %1377 = vmatmul.mubr.bf16.gmra.mrb[0].mxu0 %v526
        %v1378 = vpop.f32.mrb[0].mxu0
        %v1379 = vadd.f32 %v1330, %v1378
        %v1380 = vpop.f32.mrb[0].mxu0
        %v1381 = vpop.f32.mrb[0].mxu0
        %v1382 = vadd.f32 %v1333, %v1381
        %v1383 = vpop.f32.mrb[0].mxu0
        %1384 = vmatprep.mubr.bf16.mxu0 %v531
        %1385 = vmatmul.mubr.bf16.gmra.mrb[0].mxu0 %v530
        %v1386 = vpop.f32.mrb[0].mxu0
        %v1387 = vadd.f32 %v1338, %v1386
        %v1388 = vpop.f32.mrb[0].mxu0
        %v1389 = vpop.f32.mrb[0].mxu0
        %v1390 = vadd.f32 %v1341, %v1389
        %v1391 = vpop.f32.mrb[0].mxu0
        %1392 = vdwg.mxu0
        %1393 = vst [vmem:[%s295] sm:$0xff] %v1277
        %1394 = vst [vmem:[%s295 + $0x8] sm:$0xff] %v1279
        %1395 = vst [vmem:[%s295 + $0x10] sm:$0xff] %v1379
        %1396 = vst [vmem:[%s295 + $0x18] sm:$0xff] %v1281
        %1397 = vst [vmem:[%s295 + $0x20] sm:$0xff] %v1283
        %1398 = vst [vmem:[%s295 + $0x28] sm:$0xff] %v1382
        %1399 = vst [vmem:[%s295 + $0x30] sm:$0xff] %v1287
        %1400 = vst [vmem:[%s295 + $0x38] sm:$0xff] %v1289
        %1401 = vst [vmem:[%s295 + $0x40] sm:$0xff] %v1387
        %1402 = vst [vmem:[%s295 + $0x48] sm:$0xff] %v1291
        %1403 = vst [vmem:[%s295 + $0x50] sm:$0xff] %v1293
        %1404 = vst [vmem:[%s295 + $0x58] sm:$0xff] %v1390
        %s1405 = sand.u32 %s162, 1
        %s1406 = sand.u32 %s162, 1
        %s1407 = smul.addr %s1406, 96
        %s1408 = scalar_lea.vmem [#allocation6], %s1407
        // Predicated region
        $region49: #{rna_decoder.1} parent=39 // pred_check
          %p1409 = pneg %p172
        $region50: #{rna_decoder.1} parent=39 // pred_check_branch
          %1411 = sbr.rel (%p1409) target = $region52
        $region51: #{rna_decoder.1} parent=39 // pred_region
          %s1412 = smul.u32 4, %s25
          %s1413 = smul.u32 3, %s24
          %s1414 = smul.addr %s1412, 6
          %s1415 = sadd.s32 %s1413, %s1414
          %s1416 = smul.addr %s1415, 8
          %s1417 = scalar_lea.vmem %s5, %s1416
          // Predicated region
          $region53: #{rna_decoder.1} parent=51 // pred_check
            _
          $region54: #{rna_decoder.1} parent=51 // pred_check_branch
            %1419 = sbr.rel (0) target = $region56
          $region55: #{rna_decoder.1} parent=51 // pred_region
            // Predicated region
            $region57: #{rna_decoder.1} parent=55 // pred_check
              _
            $region58: #{rna_decoder.1} parent=55 // pred_check_branch
              %1421 = sbr.rel (0) target = $region60
            $region59: #{rna_decoder.1} parent=55 // pred_region
              loop: start=0, step=1, limit=1
              $region61: #{rna_decoder.1} parent=59 // loop_pre_header
                _
              $region62: #{rna_decoder.1} parent=59 // loop_header
                %s1423 = sphi 0, %s1427
                %p1424 = scmp.ge.s32.totalorder %s1423, 1
                %s1428 = sphi %s1408, %s1408
                %s1429 = sphi %s1417, %s1417
              $region63: #{rna_decoder.1} parent=59 // loop_header_branch
                %1426 = sbr.rel (%p1424) target = $region67
              $region64: #{rna_decoder.1} parent=59 // loop_body
                %v1430 = vld [vmem:[%s1428] sm:$0xff]
                %1431 = vst [vmem:[%s1429] sm:$0xff] %v1430
                %v1432 = vld [vmem:[%s1428 + $0x8] sm:$0xff]
                %1433 = vst [vmem:[%s1429 + $0x8] sm:$0xff] %v1432
                %v1434 = vld [vmem:[%s1428 + $0x10] sm:$0xff]
                %1435 = vst [vmem:[%s1429 + $0x10] sm:$0xff] %v1434
                %v1436 = vld [vmem:[%s1428 + $0x18] sm:$0xff]
                %1437 = vst [vmem:[%s1429 + $0x30] sm:$0xff] %v1436
                %v1438 = vld [vmem:[%s1428 + $0x20] sm:$0xff]
                %1439 = vst [vmem:[%s1429 + $0x38] sm:$0xff] %v1438
                %v1440 = vld [vmem:[%s1428 + $0x28] sm:$0xff]
                %1441 = vst [vmem:[%s1429 + $0x40] sm:$0xff] %v1440
                %v1442 = vld [vmem:[%s1428 + $0x30] sm:$0xff]
                %1443 = vst [vmem:[%s1429 + $0x60] sm:$0xff] %v1442
                %v1444 = vld [vmem:[%s1428 + $0x38] sm:$0xff]
                %1445 = vst [vmem:[%s1429 + $0x68] sm:$0xff] %v1444
                %v1446 = vld [vmem:[%s1428 + $0x40] sm:$0xff]
                %1447 = vst [vmem:[%s1429 + $0x70] sm:$0xff] %v1446
                %v1448 = vld [vmem:[%s1428 + $0x48] sm:$0xff]
                %1449 = vst [vmem:[%s1429 + $0x90] sm:$0xff] %v1448
                %v1450 = vld [vmem:[%s1428 + $0x50] sm:$0xff]
                %1451 = vst [vmem:[%s1429 + $0x98] sm:$0xff] %v1450
                %v1452 = vld [vmem:[%s1428 + $0x58] sm:$0xff]
                %1453 = vst [vmem:[%s1429 + $0xa0] sm:$0xff] %v1452
              $region65: #{rna_decoder.1} parent=59 // loop_footer
                %s1427 = sadd.s32 1, %s1423
              $region66: #{rna_decoder.1} parent=59 // loop_footer_branch
                %1422 = sbr.rel target = $region62
              $region67: #{rna_decoder.1} parent=59 // loop_exit
                _
            $region60: #{rna_decoder.1} parent=55 // pred_fallthru
              _
            // Predicated region
            $region68: #{rna_decoder.1} parent=55 // pred_check
              _
            $region69: #{rna_decoder.1} parent=55 // pred_check_branch
              %1455 = sbr.rel target = $region71
            $region70: #{rna_decoder.1} parent=55 // pred_region
              _
            $region71: #{rna_decoder.1} parent=55 // pred_fallthru
              _
          $region56: #{rna_decoder.1} parent=51 // pred_fallthru
            _
          %1456 = vnop
        $region52: #{rna_decoder.1} parent=39 // pred_fallthru
          _
      $region40: #{rna_decoder.1} parent=5 // pred_fallthru
        _
      %p1457 = scmp.le.s32.totalorder 2, %s15
      // Predicated region
      $region72: #{rna_decoder.1} parent=5 // pred_check
        %p1458 = pneg %p1457
      $region73: #{rna_decoder.1} parent=5 // pred_check_branch
        %1460 = sbr.rel (%p1458) target = $region75
      $region74: #{rna_decoder.1} parent=5 // pred_region
        %s1461 = ssub.s32 %s15, 2
        // Predicated region
        $region76: #{rna_decoder.1} parent=74 // pred_check
          %p1462 = pneg %p178
        $region77: #{rna_decoder.1} parent=74 // pred_check_branch
          %1464 = sbr.rel (%p1462) target = $region79
        $region78: #{rna_decoder.1} parent=74 // pred_region
          %s1465 = sand.u32 %s163, 1
          %s1466 = sand.u32 %s163, 1
          %s1467 = smul.addr %s1466, 96
          %s1468 = scalar_lea.vmem [#allocation6], %s1467
        $region79: #{rna_decoder.1} parent=74 // pred_fallthru
          _
      $region75: #{rna_decoder.1} parent=5 // pred_fallthru
        _
    $region6: #{rna_decoder.1} parent=1 // loop_footer
      %s19 = sadd.s32 1, %s15
    $region7: #{rna_decoder.1} parent=1 // loop_footer_branch
      %14 = sbr.rel target = $region3
    $region8: #{rna_decoder.1} parent=1 // loop_exit
      _
    %1469 = vsyncpa [#allocation3], 1
    %s1470 = scalar_lea.sflag [#allocation3], 1
    %1471 = vsyncpa %s1470, 1
    %1472 = vsyncpa [#allocation5], 1
    %s1473 = scalar_lea.sflag [#allocation5], 1
    %1474 = vsyncpa %s1473, 1

</llo_original>
